<compile_context>
chip_gen: v6e
topology: v6e:2x2x1
jax: 0.10.0
libtpu: 0.0.40
codegen_flags: <defaults>
</compile_context>

<pallas_src>
import functools

import jax
import jax.numpy as jnp
from jax.experimental import pallas as pl
from jax.experimental.pallas import tpu as pltpu

LN_EPS = 1e-5  # PyTorch nn.LayerNorm default
_LANE = 128
_SUBLANE = 8


def _round_up(x, m):
    return ((x + m - 1) // m) * m


def _layernorm(h, gamma, beta, inv_n):
    """LayerNorm over the last dim, correct under zero-padded lanes.

    `inv_n` is 1 / true_feature_count (compile-time constant).  Padded lanes
    of `h` are exactly zero, so sum and sum-of-squares over the padded width
    equal those over the true width.  gamma/beta are zero-padded, so padded
    lanes of the result are exactly 0.

    Note: one-pass variance (E[x^2]-E[x]^2) saves an XLU reduction vs the
    centered two-pass form; the max(...,0) clamp guards against negative
    round-off.  Fine for post-linear activations of this scale.
    """
    s = jnp.sum(h, axis=-1, keepdims=True)
    ss = jnp.sum(h * h, axis=-1, keepdims=True)
    mean = s * inv_n
    var = jnp.maximum(ss * inv_n - mean * mean, 0.0)
    return (h - mean) * jax.lax.rsqrt(var + LN_EPS) * gamma + beta


def _actor_kernel(x_ref,
                  w1_ref, ln1_ref,
                  w2_ref, ln2_ref,
                  wmu_ref, bmu_ref,
                  out_ref, *, inv_n1, inv_n2):
    # Cast the f32 state tile to the matmul operand dtype in-kernel (cheap VPU
    # op hidden under the per-tile DMA; avoids a wrapper-side HBM round trip).
    x = x_ref[...].astype(w1_ref.dtype)

    # fc1 -> LayerNorm -> ReLU   (dot in operand dtype, f32 accumulate)
    ln1 = ln1_ref[...]            # (8, F1) f32: rows 0=bias, 1=gamma, 2=beta
    h = jnp.dot(x, w1_ref[...], preferred_element_type=jnp.float32) + ln1[0:1]
    h = jnp.maximum(_layernorm(h, ln1[1:2], ln1[2:3], inv_n1), 0.0)

    # fc2 -> LayerNorm -> ReLU
    ln2 = ln2_ref[...]
    h = jnp.dot(h.astype(w2_ref.dtype), w2_ref[...],
                preferred_element_type=jnp.float32) + ln2[0:1]
    h = jnp.maximum(_layernorm(h, ln2[1:2], ln2[2:3], inv_n2), 0.0)

    # mu -> tanh
    a = jnp.dot(h.astype(wmu_ref.dtype), wmu_ref[...],
                preferred_element_type=jnp.float32) + bmu_ref[0:1]
    out_ref[...] = jnp.tanh(a).astype(out_ref.dtype)


def prepare_actor_params(params, matmul_dtype=jnp.bfloat16):
    """Pad + cast params ONCE.  Cache the result across forward calls.

    Weights are cast to `matmul_dtype` (bf16 recommended on all TPU
    generations); bias / LayerNorm params stay f32 and are stacked per layer
    into a single (8, F) tile: row 0 = bias, row 1 = gamma, row 2 = beta.
    """
    input_dims = int(params["w1"].shape[0])
    fc1_dims = int(params["w1"].shape[1])
    fc2_dims = int(params["w2"].shape[1])
    action_dims = int(params["w_mu"].shape[1])

    F1 = _round_up(fc1_dims, _LANE)
    F2 = _round_up(fc2_dims, _LANE)
    A = _round_up(action_dims, _LANE)

    def pad2(a, rows, cols, dtype):
        a = jnp.asarray(a)
        a = jnp.pad(a, ((0, rows - a.shape[0]), (0, cols - a.shape[1])))
        return a.astype(dtype)

    def stack8(rows, cols):
        rows = [jnp.pad(jnp.asarray(r, jnp.float32),
                        ((0, 0), (0, cols - r.shape[1]))) for r in rows]
        s = jnp.concatenate(rows, axis=0)
        return jnp.pad(s, ((0, _SUBLANE - s.shape[0]), (0, 0)))

    return {
        "w1": pad2(params["w1"], input_dims, F1, matmul_dtype),
        "w2": pad2(params["w2"], F1, F2, matmul_dtype),
        "w_mu": pad2(params["w_mu"], F2, A, matmul_dtype),
        "ln1": stack8([params["b1"], params["g1"], params["beta1"]], F1),
        "ln2": stack8([params["b2"], params["g2"], params["beta2"]], F2),
        "b_mu": stack8([params["b_mu"]], A),
        "dims": (input_dims, fc1_dims, fc2_dims, action_dims),
    }


def actor_forward(state, prepared, *, batch_tile=512, out_dtype=jnp.float32,
                  single_buffer_weights=True):
    """state: (B, input_dims) f32.  prepared: output of prepare_actor_params."""
    input_dims, fc1_dims, fc2_dims, action_dims = prepared["dims"]
    B, in_d = state.shape
    assert in_d == input_dims, (in_d, input_dims)

    w1, w2, wmu = prepared["w1"], prepared["w2"], prepared["w_mu"]
    ln1, ln2, bmu = prepared["ln1"], prepared["ln2"], prepared["b_mu"]
    F1, F2, A = w1.shape[1], w2.shape[1], wmu.shape[1]

    # Batch tiling (TB multiple of 8).  Cap so the grid has >=2 steps whenever
    # the batch allows it ("parallel" can then shard across v7x's 2 cores).
    tb = min(batch_tile, _round_up(B, _SUBLANE))
    if B > _SUBLANE:
        tb = min(tb, _round_up(pl.cdiv(_round_up(B, _SUBLANE), 2), _SUBLANE))
    Bp = _round_up(B, tb)

    x = state
    if Bp != B:
        x = jnp.pad(x, ((0, Bp - B), (0, 0)))

    inputs = (x, w1, ln1, w2, ln2, wmu, bmu)

    # --- VMEM budget (drives vmem_limit_bytes; important on v7x: 64 MiB) ----
    def nbytes(a):
        return a.size * jnp.dtype(a.dtype).itemsize

    wbuf = 1 if single_buffer_weights else 2
    weight_bytes = sum(nbytes(a) for a in inputs[1:])
    io_bytes = 2 * (tb * input_dims * jnp.dtype(x.dtype).itemsize
                    + tb * A * jnp.dtype(out_dtype).itemsize)
    vmem_limit = 2 * (wbuf * weight_bytes + io_bytes) + (4 << 20)  # headroom
    vmem_limit = int(min(max(vmem_limit, 16 << 20), 64 << 20))

    # --- cost estimate ------------------------------------------------------
    w_itemsize = jnp.dtype(w1.dtype).itemsize
    flops = 2 * Bp * (input_dims * F1 + F1 * F2 + F2 * A)
    bytes_accessed = int(
        Bp * input_dims * jnp.dtype(x.dtype).itemsize        # state
        + (input_dims * F1 + F1 * F2 + F2 * A) * w_itemsize  # weights
        + _SUBLANE * (F1 + F2 + A) * 4                       # bias/LN stacks
        + Bp * A * jnp.dtype(out_dtype).itemsize)            # output
    cost = pl.CostEstimate(flops=flops,
                           transcendentals=Bp * (A + 2),     # tanh + 2x rsqrt
                           bytes_accessed=bytes_accessed)

    kernel = functools.partial(_actor_kernel,
                               inv_n1=1.0 / float(fc1_dims),
                               inv_n2=1.0 / float(fc2_dims))

    def resident_spec(a, single_buffer):
        # Constant index_map -> block never changes -> stays VMEM-resident.
        nd = a.ndim
        kwargs = {}
        if single_buffer:
            kwargs["pipeline_mode"] = pl.Buffered(1)  # no double buffer needed
        return pl.BlockSpec(a.shape, lambda i, nd=nd: (0,) * nd, **kwargs)

    def call(single_buffer):
        in_specs = [pl.BlockSpec((tb, input_dims), lambda i: (i, 0))]
        in_specs += [resident_spec(a, single_buffer) for a in inputs[1:]]
        out_spec = pl.BlockSpec((tb, A), lambda i: (i, 0))
        return pl.pallas_call(
            kernel,
            out_shape=jax.ShapeDtypeStruct((Bp, A), out_dtype),
            grid=(Bp // tb,),
            in_specs=in_specs,
            out_specs=out_spec,
            compiler_params=pltpu.CompilerParams(
                dimension_semantics=("parallel",),
                vmem_limit_bytes=vmem_limit),
            cost_estimate=cost,
        )(*inputs)

    if single_buffer_weights:
        try:
            out = call(True)
        except Exception:  # jax build without Buffered(1) resident-block support
            out = call(False)
    else:
        out = call(False)

    return out[:B, :action_dims]


def init_actor_params(key, input_dims, fc1_dims, fc2_dims, action_dims):
    """Deterministic synthetic init (uniform, PyTorch-Linear-like scale)."""
    ks = jax.random.split(key, 6)

    def lin(kw, kb, fan_in, fan_out):
        bound = 1.0 / jnp.sqrt(float(fan_in))
        w = jax.random.uniform(kw, (fan_in, fan_out), jnp.float32, -bound, bound)
        b = jax.random.uniform(kb, (1, fan_out), jnp.float32, -bound, bound)
        return w, b

    w1, b1 = lin(ks[0], ks[1], input_dims, fc1_dims)
    w2, b2 = lin(ks[2], ks[3], fc1_dims, fc2_dims)
    w_mu, b_mu = lin(ks[4], ks[5], fc2_dims, action_dims)

    return {
        "w1": w1, "b1": b1,
        "g1": jnp.ones((1, fc1_dims), jnp.float32),
        "beta1": jnp.zeros((1, fc1_dims), jnp.float32),
        "w2": w2, "b2": b2,
        "g2": jnp.ones((1, fc2_dims), jnp.float32),
        "beta2": jnp.zeros((1, fc2_dims), jnp.float32),
        "w_mu": w_mu, "b_mu": b_mu,
    }


def actor_reference(state, p):
    """Pure-JAX reference matching the PyTorch module."""
    def ln(h, g, b):
        m = jnp.mean(h, axis=-1, keepdims=True)
        v = jnp.mean((h - m) ** 2, axis=-1, keepdims=True)
        return (h - m) / jnp.sqrt(v + LN_EPS) * g + b

    h = jnp.maximum(ln(state @ p["w1"] + p["b1"], p["g1"], p["beta1"]), 0.0)
    h = jnp.maximum(ln(h @ p["w2"] + p["b2"], p["g2"], p["beta2"]), 0.0)
    return jnp.tanh(h @ p["w_mu"] + p["b_mu"])


if __name__ == "__main__":
    key = jax.random.PRNGKey(0)
    k_state, k_params = jax.random.split(key)

    batch, input_dims, fc1_dims, fc2_dims, action_dims = 8, 16, 32, 32, 4

    params = init_actor_params(k_params, input_dims, fc1_dims, fc2_dims,
                               action_dims)
    state = jax.random.normal(k_state, (batch, input_dims), jnp.float32)

    ref = actor_reference(state, params)

    # f32 matmul path: exact semantics of the PyTorch module.
    prepared_f32 = prepare_actor_params(params, matmul_dtype=jnp.float32)
    out_f32 = jax.block_until_ready(actor_forward(state, prepared_f32))
    assert out_f32.shape == (batch, action_dims)
    assert jnp.allclose(out_f32, ref, atol=2e-5, rtol=2e-5), "f32 mismatch"

    # Default path: bf16 matmul operands (MXU-native on all generations),
    # params padded/cast once and reused across calls.
    prepared = prepare_actor_params(params)  # bf16 default
    out_bf16 = jax.block_until_ready(actor_forward(state, prepared))
    assert out_bf16.shape == (batch, action_dims)
    assert jnp.allclose(out_bf16, ref, atol=5e-2), "bf16 mismatch vs reference"

    print("KERNEL_OK")
</pallas_src>

<mosaic_0001>
module attributes {stable_mosaic.version = 11 : i64} {
  func.func @_actor_kernel(%arg0: i32, %arg1: memref<8x16xf32, #tpu.memory_space<vmem>>, %arg2: memref<16x128xf32, #tpu.memory_space<vmem>>, %arg3: memref<8x128xf32, #tpu.memory_space<vmem>>, %arg4: memref<128x128xf32, #tpu.memory_space<vmem>>, %arg5: memref<8x128xf32, #tpu.memory_space<vmem>>, %arg6: memref<128x128xf32, #tpu.memory_space<vmem>>, %arg7: memref<8x128xf32, #tpu.memory_space<vmem>>, %arg8: memref<8x128xf32, #tpu.memory_space<vmem>>) attributes {dimension_semantics = [#tpu.dimension_semantics<parallel>], iteration_bounds = array<i64: 1>, scalar_prefetch = 0 : i64, scratch_operands = 0 : i64, tpu.core_type = #tpu.core_type<tc>, window_params = [{transform_indices = @transform_0, window_bounds = array<i64: 8, 16>}, {pipeline_mode = #tpu.pipeline_mode<synchronous>, transform_indices = @transform_1, window_bounds = array<i64: 16, 128>}, {pipeline_mode = #tpu.pipeline_mode<synchronous>, transform_indices = @transform_2, window_bounds = array<i64: 8, 128>}, {pipeline_mode = #tpu.pipeline_mode<synchronous>, transform_indices = @transform_3, window_bounds = array<i64: 128, 128>}, {pipeline_mode = #tpu.pipeline_mode<synchronous>, transform_indices = @transform_4, window_bounds = array<i64: 8, 128>}, {pipeline_mode = #tpu.pipeline_mode<synchronous>, transform_indices = @transform_5, window_bounds = array<i64: 128, 128>}, {pipeline_mode = #tpu.pipeline_mode<synchronous>, transform_indices = @transform_6, window_bounds = array<i64: 8, 128>}, {transform_indices = @transform_7, window_bounds = array<i64: 8, 128>}]} {
    %c0 = arith.constant 0 : index
    %c0_0 = arith.constant 0 : index
    %0 = vector.load %arg1[%c0, %c0_0] : memref<8x16xf32, #tpu.memory_space<vmem>>, vector<8x16xf32>
    %c0_1 = arith.constant 0 : index
    %c0_2 = arith.constant 0 : index
    %1 = vector.load %arg3[%c0_1, %c0_2] : memref<8x128xf32, #tpu.memory_space<vmem>>, vector<8x128xf32>
    %c0_3 = arith.constant 0 : index
    %c0_4 = arith.constant 0 : index
    %2 = vector.load %arg2[%c0_3, %c0_4] : memref<16x128xf32, #tpu.memory_space<vmem>>, vector<16x128xf32>
    %cst = arith.constant dense<0.000000e+00> : vector<8x128xf32>
    %3 = tpu.matmul %0, %2, %cst {dimension_numbers = #tpu.dot_dimension_numbers<[1], [0], [0], [1], [0, 0, 1, 1], [], []>} : vector<8x16xf32>, vector<16x128xf32>, vector<8x128xf32> -> vector<8x128xf32>
    %4 = vector.extract_strided_slice %1 {offsets = [0, 0], sizes = [1, 128], strides = [1, 1]} : vector<8x128xf32> to vector<1x128xf32>
    %5 = vector.broadcast %4 : vector<1x128xf32> to vector<8x128xf32>
    %6 = arith.addf %3, %5 : vector<8x128xf32>
    %7 = vector.extract_strided_slice %1 {offsets = [1, 0], sizes = [1, 128], strides = [1, 1]} : vector<8x128xf32> to vector<1x128xf32>
    %8 = vector.extract_strided_slice %1 {offsets = [2, 0], sizes = [1, 128], strides = [1, 1]} : vector<8x128xf32> to vector<1x128xf32>
    %cst_5 = arith.constant dense<0.000000e+00> : vector<8xf32>
    %9 = vector.multi_reduction <add>, %6, %cst_5 [1] : vector<8x128xf32> to vector<8xf32>
    %10 = vector.shape_cast %9 : vector<8xf32> to vector<8x1xf32>
    %11 = arith.mulf %6, %6 : vector<8x128xf32>
    %cst_6 = arith.constant dense<0.000000e+00> : vector<8xf32>
    %12 = vector.multi_reduction <add>, %11, %cst_6 [1] : vector<8x128xf32> to vector<8xf32>
    %13 = vector.shape_cast %12 : vector<8xf32> to vector<8x1xf32>
    %cst_7 = arith.constant 3.125000e-02 : f32
    %14 = vector.broadcast %cst_7 : f32 to vector<8x1xf32>
    %15 = arith.mulf %10, %14 : vector<8x1xf32>
    %cst_8 = arith.constant 3.125000e-02 : f32
    %16 = vector.broadcast %cst_8 : f32 to vector<8x1xf32>
    %17 = arith.mulf %13, %16 : vector<8x1xf32>
    %18 = arith.mulf %15, %15 : vector<8x1xf32>
    %19 = arith.subf %17, %18 : vector<8x1xf32>
    %cst_9 = arith.constant 0.000000e+00 : f32
    %20 = vector.broadcast %cst_9 : f32 to vector<8x1xf32>
    %21 = arith.maximumf %19, %20 : vector<8x1xf32>
    %22 = vector.broadcast %15 : vector<8x1xf32> to vector<8x128xf32>
    %23 = arith.subf %6, %22 : vector<8x128xf32>
    %cst_10 = arith.constant 9.99999974E-6 : f32
    %24 = vector.broadcast %cst_10 : f32 to vector<8x1xf32>
    %25 = arith.addf %21, %24 : vector<8x1xf32>
    %26 = math.rsqrt %25 : vector<8x1xf32>
    %27 = vector.broadcast %26 : vector<8x1xf32> to vector<8x128xf32>
    %28 = arith.mulf %23, %27 : vector<8x128xf32>
    %29 = vector.broadcast %7 : vector<1x128xf32> to vector<8x128xf32>
    %30 = arith.mulf %28, %29 : vector<8x128xf32>
    %31 = vector.broadcast %8 : vector<1x128xf32> to vector<8x128xf32>
    %32 = arith.addf %30, %31 : vector<8x128xf32>
    %cst_11 = arith.constant 0.000000e+00 : f32
    %33 = vector.broadcast %cst_11 : f32 to vector<8x128xf32>
    %34 = arith.maximumf %32, %33 : vector<8x128xf32>
    %c0_12 = arith.constant 0 : index
    %c0_13 = arith.constant 0 : index
    %35 = vector.load %arg5[%c0_12, %c0_13] : memref<8x128xf32, #tpu.memory_space<vmem>>, vector<8x128xf32>
    %c0_14 = arith.constant 0 : index
    %c0_15 = arith.constant 0 : index
    %36 = vector.load %arg4[%c0_14, %c0_15] : memref<128x128xf32, #tpu.memory_space<vmem>>, vector<128x128xf32>
    %cst_16 = arith.constant dense<0.000000e+00> : vector<8x128xf32>
    %37 = tpu.matmul %34, %36, %cst_16 {dimension_numbers = #tpu.dot_dimension_numbers<[1], [0], [0], [1], [0, 0, 1, 1], [], []>} : vector<8x128xf32>, vector<128x128xf32>, vector<8x128xf32> -> vector<8x128xf32>
    %38 = vector.extract_strided_slice %35 {offsets = [0, 0], sizes = [1, 128], strides = [1, 1]} : vector<8x128xf32> to vector<1x128xf32>
    %39 = vector.broadcast %38 : vector<1x128xf32> to vector<8x128xf32>
    %40 = arith.addf %37, %39 : vector<8x128xf32>
    %41 = vector.extract_strided_slice %35 {offsets = [1, 0], sizes = [1, 128], strides = [1, 1]} : vector<8x128xf32> to vector<1x128xf32>
    %42 = vector.extract_strided_slice %35 {offsets = [2, 0], sizes = [1, 128], strides = [1, 1]} : vector<8x128xf32> to vector<1x128xf32>
    %cst_17 = arith.constant dense<0.000000e+00> : vector<8xf32>
    %43 = vector.multi_reduction <add>, %40, %cst_17 [1] : vector<8x128xf32> to vector<8xf32>
    %44 = vector.shape_cast %43 : vector<8xf32> to vector<8x1xf32>
    %45 = arith.mulf %40, %40 : vector<8x128xf32>
    %cst_18 = arith.constant dense<0.000000e+00> : vector<8xf32>
    %46 = vector.multi_reduction <add>, %45, %cst_18 [1] : vector<8x128xf32> to vector<8xf32>
    %47 = vector.shape_cast %46 : vector<8xf32> to vector<8x1xf32>
    %cst_19 = arith.constant 3.125000e-02 : f32
    %48 = vector.broadcast %cst_19 : f32 to vector<8x1xf32>
    %49 = arith.mulf %44, %48 : vector<8x1xf32>
    %cst_20 = arith.constant 3.125000e-02 : f32
    %50 = vector.broadcast %cst_20 : f32 to vector<8x1xf32>
    %51 = arith.mulf %47, %50 : vector<8x1xf32>
    %52 = arith.mulf %49, %49 : vector<8x1xf32>
    %53 = arith.subf %51, %52 : vector<8x1xf32>
    %cst_21 = arith.constant 0.000000e+00 : f32
    %54 = vector.broadcast %cst_21 : f32 to vector<8x1xf32>
    %55 = arith.maximumf %53, %54 : vector<8x1xf32>
    %56 = vector.broadcast %49 : vector<8x1xf32> to vector<8x128xf32>
    %57 = arith.subf %40, %56 : vector<8x128xf32>
    %cst_22 = arith.constant 9.99999974E-6 : f32
    %58 = vector.broadcast %cst_22 : f32 to vector<8x1xf32>
    %59 = arith.addf %55, %58 : vector<8x1xf32>
    %60 = math.rsqrt %59 : vector<8x1xf32>
    %61 = vector.broadcast %60 : vector<8x1xf32> to vector<8x128xf32>
    %62 = arith.mulf %57, %61 : vector<8x128xf32>
    %63 = vector.broadcast %41 : vector<1x128xf32> to vector<8x128xf32>
    %64 = arith.mulf %62, %63 : vector<8x128xf32>
    %65 = vector.broadcast %42 : vector<1x128xf32> to vector<8x128xf32>
    %66 = arith.addf %64, %65 : vector<8x128xf32>
    %cst_23 = arith.constant 0.000000e+00 : f32
    %67 = vector.broadcast %cst_23 : f32 to vector<8x128xf32>
    %68 = arith.maximumf %66, %67 : vector<8x128xf32>
    %c0_24 = arith.constant 0 : index
    %c0_25 = arith.constant 0 : index
    %69 = vector.load %arg6[%c0_24, %c0_25] : memref<128x128xf32, #tpu.memory_space<vmem>>, vector<128x128xf32>
    %cst_26 = arith.constant dense<0.000000e+00> : vector<8x128xf32>
    %70 = tpu.matmul %68, %69, %cst_26 {dimension_numbers = #tpu.dot_dimension_numbers<[1], [0], [0], [1], [0, 0, 1, 1], [], []>} : vector<8x128xf32>, vector<128x128xf32>, vector<8x128xf32> -> vector<8x128xf32>
    %c0_27 = arith.constant 0 : index
    %c0_28 = arith.constant 0 : index
    %71 = vector.load %arg7[%c0_27, %c0_28] : memref<8x128xf32, #tpu.memory_space<vmem>>, vector<1x128xf32>
    %72 = vector.broadcast %71 : vector<1x128xf32> to vector<8x128xf32>
    %73 = arith.addf %70, %72 : vector<8x128xf32>
    %74 = math.tanh %73 : vector<8x128xf32>
    %c0_29 = arith.constant 0 : index
    %c0_30 = arith.constant 0 : index
    %75 = vector.load %arg8[%c0_29, %c0_30] : memref<8x128xf32, #tpu.memory_space<vmem>>, vector<8x128xf32>
    tpu.vector_store %arg8[%c0_29, %c0_30], %74 {strides = array<i32>} : memref<8x128xf32, #tpu.memory_space<vmem>>, vector<8x128xf32>,
    return
  }
  func.func @transform_0(%arg0: i32) -> (i32, i32) {
    %c0_i32 = arith.constant 0 : i32
    %c0_i32_0 = arith.constant 0 : i32
    return %arg0, %c0_i32 : i32, i32
  }
  func.func @transform_1(%arg0: i32) -> (i32, i32) {
    %c0_i32 = arith.constant 0 : i32
    %c0_i32_0 = arith.constant 0 : i32
    %c0_i32_1 = arith.constant 0 : i32
    return %c0_i32, %c0_i32_0 : i32, i32
  }
  func.func @transform_2(%arg0: i32) -> (i32, i32) {
    %c0_i32 = arith.constant 0 : i32
    %c0_i32_0 = arith.constant 0 : i32
    %c0_i32_1 = arith.constant 0 : i32
    return %c0_i32, %c0_i32_0 : i32, i32
  }
  func.func @transform_3(%arg0: i32) -> (i32, i32) {
    %c0_i32 = arith.constant 0 : i32
    %c0_i32_0 = arith.constant 0 : i32
    %c0_i32_1 = arith.constant 0 : i32
    return %c0_i32, %c0_i32_0 : i32, i32
  }
  func.func @transform_4(%arg0: i32) -> (i32, i32) {
    %c0_i32 = arith.constant 0 : i32
    %c0_i32_0 = arith.constant 0 : i32
    %c0_i32_1 = arith.constant 0 : i32
    return %c0_i32, %c0_i32_0 : i32, i32
  }
  func.func @transform_5(%arg0: i32) -> (i32, i32) {
    %c0_i32 = arith.constant 0 : i32
    %c0_i32_0 = arith.constant 0 : i32
    %c0_i32_1 = arith.constant 0 : i32
    return %c0_i32, %c0_i32_0 : i32, i32
  }
  func.func @transform_6(%arg0: i32) -> (i32, i32) {
    %c0_i32 = arith.constant 0 : i32
    %c0_i32_0 = arith.constant 0 : i32
    %c0_i32_1 = arith.constant 0 : i32
    return %c0_i32, %c0_i32_0 : i32, i32
  }
  func.func @transform_7(%arg0: i32) -> (i32, i32) {
    %c0_i32 = arith.constant 0 : i32
    %c0_i32_0 = arith.constant 0 : i32
    return %arg0, %c0_i32 : i32, i32
  }
}

module attributes {stable_mosaic.version = 11 : i64} {
  func.func @_actor_kernel(%arg0: i32, %arg1: memref<8x16xf32, #tpu.memory_space<vmem>>, %arg2: memref<16x128xf32, #tpu.memory_space<vmem>>, %arg3: memref<8x128xf32, #tpu.memory_space<vmem>>, %arg4: memref<128x128xf32, #tpu.memory_space<vmem>>, %arg5: memref<8x128xf32, #tpu.memory_space<vmem>>, %arg6: memref<128x128xf32, #tpu.memory_space<vmem>>, %arg7: memref<8x128xf32, #tpu.memory_space<vmem>>, %arg8: memref<8x128xf32, #tpu.memory_space<vmem>>) attributes {dimension_semantics = [#tpu.dimension_semantics<parallel>], iteration_bounds = array<i64: 1>, scalar_prefetch = 0 : i64, scratch_operands = 0 : i64, tpu.core_type = #tpu.core_type<tc>, window_params = [{transform_indices = @transform_0, window_bounds = array<i64: 8, 16>}, {pipeline_mode = #tpu.pipeline_mode<synchronous>, transform_indices = @transform_1, window_bounds = array<i64: 16, 128>}, {pipeline_mode = #tpu.pipeline_mode<synchronous>, transform_indices = @transform_2, window_bounds = array<i64: 8, 128>}, {pipeline_mode = #tpu.pipeline_mode<synchronous>, transform_indices = @transform_3, window_bounds = array<i64: 128, 128>}, {pipeline_mode = #tpu.pipeline_mode<synchronous>, transform_indices = @transform_4, window_bounds = array<i64: 8, 128>}, {pipeline_mode = #tpu.pipeline_mode<synchronous>, transform_indices = @transform_5, window_bounds = array<i64: 128, 128>}, {pipeline_mode = #tpu.pipeline_mode<synchronous>, transform_indices = @transform_6, window_bounds = array<i64: 8, 128>}, {transform_indices = @transform_7, window_bounds = array<i64: 8, 128>}]} {
    %c0 = arith.constant 0 : index
    %c0_0 = arith.constant 0 : index
    %0 = vector.load %arg1[%c0, %c0_0] : memref<8x16xf32, #tpu.memory_space<vmem>>, vector<8x16xf32>
    %c0_1 = arith.constant 0 : index
    %c0_2 = arith.constant 0 : index
    %1 = vector.load %arg3[%c0_1, %c0_2] : memref<8x128xf32, #tpu.memory_space<vmem>>, vector<8x128xf32>
    %c0_3 = arith.constant 0 : index
    %c0_4 = arith.constant 0 : index
    %2 = vector.load %arg2[%c0_3, %c0_4] : memref<16x128xf32, #tpu.memory_space<vmem>>, vector<16x128xf32>
    %cst = arith.constant dense<0.000000e+00> : vector<8x128xf32>
    %3 = tpu.matmul %0, %2, %cst {dimension_numbers = #tpu.dot_dimension_numbers<[1], [0], [0], [1], [0, 0, 1, 1], [], []>} : vector<8x16xf32>, vector<16x128xf32>, vector<8x128xf32> -> vector<8x128xf32>
    %4 = vector.extract_strided_slice %1 {offsets = [0, 0], sizes = [1, 128], strides = [1, 1]} : vector<8x128xf32> to vector<1x128xf32>
    %5 = vector.broadcast %4 : vector<1x128xf32> to vector<8x128xf32>
    %6 = arith.addf %3, %5 : vector<8x128xf32>
    %7 = vector.extract_strided_slice %1 {offsets = [1, 0], sizes = [1, 128], strides = [1, 1]} : vector<8x128xf32> to vector<1x128xf32>
    %8 = vector.extract_strided_slice %1 {offsets = [2, 0], sizes = [1, 128], strides = [1, 1]} : vector<8x128xf32> to vector<1x128xf32>
    %cst_5 = arith.constant dense<0.000000e+00> : vector<8xf32>
    %9 = vector.multi_reduction <add>, %6, %cst_5 [1] : vector<8x128xf32> to vector<8xf32>
    %10 = vector.shape_cast %9 : vector<8xf32> to vector<8x1xf32>
    %11 = arith.mulf %6, %6 : vector<8x128xf32>
    %cst_6 = arith.constant dense<0.000000e+00> : vector<8xf32>
    %12 = vector.multi_reduction <add>, %11, %cst_6 [1] : vector<8x128xf32> to vector<8xf32>
    %13 = vector.shape_cast %12 : vector<8xf32> to vector<8x1xf32>
    %cst_7 = arith.constant 3.125000e-02 : f32
    %14 = vector.broadcast %cst_7 : f32 to vector<8x1xf32>
    %15 = arith.mulf %10, %14 : vector<8x1xf32>
    %cst_8 = arith.constant 3.125000e-02 : f32
    %16 = vector.broadcast %cst_8 : f32 to vector<8x1xf32>
    %17 = arith.mulf %13, %16 : vector<8x1xf32>
    %18 = arith.mulf %15, %15 : vector<8x1xf32>
    %19 = arith.subf %17, %18 : vector<8x1xf32>
    %cst_9 = arith.constant 0.000000e+00 : f32
    %20 = vector.broadcast %cst_9 : f32 to vector<8x1xf32>
    %21 = arith.maximumf %19, %20 : vector<8x1xf32>
    %22 = vector.broadcast %15 : vector<8x1xf32> to vector<8x128xf32>
    %23 = arith.subf %6, %22 : vector<8x128xf32>
    %cst_10 = arith.constant 9.99999974E-6 : f32
    %24 = vector.broadcast %cst_10 : f32 to vector<8x1xf32>
    %25 = arith.addf %21, %24 : vector<8x1xf32>
    %26 = math.rsqrt %25 : vector<8x1xf32>
    %27 = vector.broadcast %26 : vector<8x1xf32> to vector<8x128xf32>
    %28 = arith.mulf %23, %27 : vector<8x128xf32>
    %29 = vector.broadcast %7 : vector<1x128xf32> to vector<8x128xf32>
    %30 = arith.mulf %28, %29 : vector<8x128xf32>
    %31 = vector.broadcast %8 : vector<1x128xf32> to vector<8x128xf32>
    %32 = arith.addf %30, %31 : vector<8x128xf32>
    %cst_11 = arith.constant 0.000000e+00 : f32
    %33 = vector.broadcast %cst_11 : f32 to vector<8x128xf32>
    %34 = arith.maximumf %32, %33 : vector<8x128xf32>
    %c0_12 = arith.constant 0 : index
    %c0_13 = arith.constant 0 : index
    %35 = vector.load %arg5[%c0_12, %c0_13] : memref<8x128xf32, #tpu.memory_space<vmem>>, vector<8x128xf32>
    %c0_14 = arith.constant 0 : index
    %c0_15 = arith.constant 0 : index
    %36 = vector.load %arg4[%c0_14, %c0_15] : memref<128x128xf32, #tpu.memory_space<vmem>>, vector<128x128xf32>
    %cst_16 = arith.constant dense<0.000000e+00> : vector<8x128xf32>
    %37 = tpu.matmul %34, %36, %cst_16 {dimension_numbers = #tpu.dot_dimension_numbers<[1], [0], [0], [1], [0, 0, 1, 1], [], []>} : vector<8x128xf32>, vector<128x128xf32>, vector<8x128xf32> -> vector<8x128xf32>
    %38 = vector.extract_strided_slice %35 {offsets = [0, 0], sizes = [1, 128], strides = [1, 1]} : vector<8x128xf32> to vector<1x128xf32>
    %39 = vector.broadcast %38 : vector<1x128xf32> to vector<8x128xf32>
    %40 = arith.addf %37, %39 : vector<8x128xf32>
    %41 = vector.extract_strided_slice %35 {offsets = [1, 0], sizes = [1, 128], strides = [1, 1]} : vector<8x128xf32> to vector<1x128xf32>
    %42 = vector.extract_strided_slice %35 {offsets = [2, 0], sizes = [1, 128], strides = [1, 1]} : vector<8x128xf32> to vector<1x128xf32>
    %cst_17 = arith.constant dense<0.000000e+00> : vector<8xf32>
    %43 = vector.multi_reduction <add>, %40, %cst_17 [1] : vector<8x128xf32> to vector<8xf32>
    %44 = vector.shape_cast %43 : vector<8xf32> to vector<8x1xf32>
    %45 = arith.mulf %40, %40 : vector<8x128xf32>
    %cst_18 = arith.constant dense<0.000000e+00> : vector<8xf32>
    %46 = vector.multi_reduction <add>, %45, %cst_18 [1] : vector<8x128xf32> to vector<8xf32>
    %47 = vector.shape_cast %46 : vector<8xf32> to vector<8x1xf32>
    %cst_19 = arith.constant 3.125000e-02 : f32
    %48 = vector.broadcast %cst_19 : f32 to vector<8x1xf32>
    %49 = arith.mulf %44, %48 : vector<8x1xf32>
    %cst_20 = arith.constant 3.125000e-02 : f32
    %50 = vector.broadcast %cst_20 : f32 to vector<8x1xf32>
    %51 = arith.mulf %47, %50 : vector<8x1xf32>
    %52 = arith.mulf %49, %49 : vector<8x1xf32>
    %53 = arith.subf %51, %52 : vector<8x1xf32>
    %cst_21 = arith.constant 0.000000e+00 : f32
    %54 = vector.broadcast %cst_21 : f32 to vector<8x1xf32>
    %55 = arith.maximumf %53, %54 : vector<8x1xf32>
    %56 = vector.broadcast %49 : vector<8x1xf32> to vector<8x128xf32>
    %57 = arith.subf %40, %56 : vector<8x128xf32>
    %cst_22 = arith.constant 9.99999974E-6 : f32
    %58 = vector.broadcast %cst_22 : f32 to vector<8x1xf32>
    %59 = arith.addf %55, %58 : vector<8x1xf32>
    %60 = math.rsqrt %59 : vector<8x1xf32>
    %61 = vector.broadcast %60 : vector<8x1xf32> to vector<8x128xf32>
    %62 = arith.mulf %57, %61 : vector<8x128xf32>
    %63 = vector.broadcast %41 : vector<1x128xf32> to vector<8x128xf32>
    %64 = arith.mulf %62, %63 : vector<8x128xf32>
    %65 = vector.broadcast %42 : vector<1x128xf32> to vector<8x128xf32>
    %66 = arith.addf %64, %65 : vector<8x128xf32>
    %cst_23 = arith.constant 0.000000e+00 : f32
    %67 = vector.broadcast %cst_23 : f32 to vector<8x128xf32>
    %68 = arith.maximumf %66, %67 : vector<8x128xf32>
    %c0_24 = arith.constant 0 : index
    %c0_25 = arith.constant 0 : index
    %69 = vector.load %arg6[%c0_24, %c0_25] : memref<128x128xf32, #tpu.memory_space<vmem>>, vector<128x128xf32>
    %cst_26 = arith.constant dense<0.000000e+00> : vector<8x128xf32>
    %70 = tpu.matmul %68, %69, %cst_26 {dimension_numbers = #tpu.dot_dimension_numbers<[1], [0], [0], [1], [0, 0, 1, 1], [], []>} : vector<8x128xf32>, vector<128x128xf32>, vector<8x128xf32> -> vector<8x128xf32>
    %c0_27 = arith.constant 0 : index
    %c0_28 = arith.constant 0 : index
    %71 = vector.load %arg7[%c0_27, %c0_28] : memref<8x128xf32, #tpu.memory_space<vmem>>, vector<1x128xf32>
    %72 = vector.broadcast %71 : vector<1x128xf32> to vector<8x128xf32>
    %73 = arith.addf %70, %72 : vector<8x128xf32>
    %74 = math.tanh %73 : vector<8x128xf32>
    %c0_29 = arith.constant 0 : index
    %c0_30 = arith.constant 0 : index
    %75 = vector.load %arg8[%c0_29, %c0_30] : memref<8x128xf32, #tpu.memory_space<vmem>>, vector<8x128xf32>
    tpu.vector_store %arg8[%c0_29, %c0_30], %74 {strides = array<i32>} : memref<8x128xf32, #tpu.memory_space<vmem>>, vector<8x128xf32>,
    return
  }
  func.func @transform_0(%arg0: i32) -> (i32, i32) {
    %c0_i32 = arith.constant 0 : i32
    %c0_i32_0 = arith.constant 0 : i32
    return %arg0, %c0_i32 : i32, i32
  }
  func.func @transform_1(%arg0: i32) -> (i32, i32) {
    %c0_i32 = arith.constant 0 : i32
    %c0_i32_0 = arith.constant 0 : i32
    %c0_i32_1 = arith.constant 0 : i32
    return %c0_i32, %c0_i32_0 : i32, i32
  }
  func.func @transform_2(%arg0: i32) -> (i32, i32) {
    %c0_i32 = arith.constant 0 : i32
    %c0_i32_0 = arith.constant 0 : i32
    %c0_i32_1 = arith.constant 0 : i32
    return %c0_i32, %c0_i32_0 : i32, i32
  }
  func.func @transform_3(%arg0: i32) -> (i32, i32) {
    %c0_i32 = arith.constant 0 : i32
    %c0_i32_0 = arith.constant 0 : i32
    %c0_i32_1 = arith.constant 0 : i32
    return %c0_i32, %c0_i32_0 : i32, i32
  }
  func.func @transform_4(%arg0: i32) -> (i32, i32) {
    %c0_i32 = arith.constant 0 : i32
    %c0_i32_0 = arith.constant 0 : i32
    %c0_i32_1 = arith.constant 0 : i32
    return %c0_i32, %c0_i32_0 : i32, i32
  }
  func.func @transform_5(%arg0: i32) -> (i32, i32) {
    %c0_i32 = arith.constant 0 : i32
    %c0_i32_0 = arith.constant 0 : i32
    %c0_i32_1 = arith.constant 0 : i32
    return %c0_i32, %c0_i32_0 : i32, i32
  }
  func.func @transform_6(%arg0: i32) -> (i32, i32) {
    %c0_i32 = arith.constant 0 : i32
    %c0_i32_0 = arith.constant 0 : i32
    %c0_i32_1 = arith.constant 0 : i32
    return %c0_i32, %c0_i32_0 : i32, i32
  }
  func.func @transform_7(%arg0: i32) -> (i32, i32) {
    %c0_i32 = arith.constant 0 : i32
    %c0_i32_0 = arith.constant 0 : i32
    return %arg0, %c0_i32 : i32, i32
  }
}

</mosaic_0001>

<llo_original>
// kernel: tpu_custom_call.1
$region0: #{tpu_custom_call.1}
  #allocation0 [shape = 'u32[]', space=smem, size = 0x4, offset = 0x4, fixed_abs, tag = 'smem constant byte address 0x4 - core index']
  #allocation1 [shape = 'u32[144,128]{1,0:T(1,128)}', space=vmem, size = 0x12000, scoped, tag = 'internal scratch']
  %s0 = inlined_call_operand.hbm [shape: f32[8,16], index: 0, kind: input, shape index: {}]
  %s1 = inlined_call_operand.hbm [shape: f32[16,128], index: 1, kind: input, shape index: {}]
  %s2 = inlined_call_operand.hbm [shape: f32[8,128], index: 2, kind: input, shape index: {}]
  %s3 = inlined_call_operand.hbm [shape: f32[128,128], index: 3, kind: input, shape index: {}]
  %s4 = inlined_call_operand.hbm [shape: f32[8,128], index: 4, kind: input, shape index: {}]
  %s5 = inlined_call_operand.hbm [shape: f32[128,128], index: 5, kind: input, shape index: {}]
  %s6 = inlined_call_operand.vmem [shape: f32[8,128], index: 6, kind: input, shape index: {}]
  %s7 = inlined_call_operand.hbm [shape: f32[8,128], index: 7, kind: output, shape index: {}]
  %s8 = sld [smem:[#allocation0]]
  $region62: #{tpu_custom_call.1} parent=0
    _
  %s10 = ssub.s32 1, %s8
  %s11 = scalar_select 0, %s10, %s8
  $region1: #{tpu_custom_call.1} parent=0
    #allocation2 [shape = 'u8[4096]{0}', space=vmem, size = 0x1000, scoped, tag = 'input window, operand 0, single buffered']
    #allocation3 [shape = 's32[1]{0}', space=sflag, size = 0x4, scoped, tag = 'scoped memory for tpu_custom_call.1']
    #allocation4 [shape = 's32[1]{0}', space=sflag, size = 0x4, scoped, tag = 'scoped memory for tpu_custom_call.1']
    #allocation5 [shape = 'u8[8192]{0}', space=vmem, size = 0x2000, scoped, tag = 'input window, operand 1, single buffered']
    #allocation6 [shape = 's32[1]{0}', space=sflag, size = 0x4, scoped, tag = 'scoped memory for tpu_custom_call.1']
    #allocation7 [shape = 'u8[4096]{0}', space=vmem, size = 0x1000, scoped, tag = 'input window, operand 2, single buffered']
    #allocation8 [shape = 'u8[65536]{0}', space=vmem, size = 0x10000, scoped, tag = 'input window, operand 3, single buffered']
    #allocation9 [shape = 's32[1]{0}', space=sflag, size = 0x4, scoped, tag = 'scoped memory for tpu_custom_call.1']
    #allocation10 [shape = 'u8[4096]{0}', space=vmem, size = 0x1000, scoped, tag = 'input window, operand 4, single buffered']
    #allocation11 [shape = 'u8[65536]{0}', space=vmem, size = 0x10000, scoped, tag = 'input window, operand 5, single buffered']
    #allocation12 [shape = 's32[1]{0}', space=sflag, size = 0x4, scoped, tag = 'scoped memory for tpu_custom_call.1']
    #allocation13 [shape = 'u8[4096]{0}', space=vmem, size = 0x1000, scoped, tag = 'output window, operand 0, single buffered']
    %12 = vsyncpa [#allocation3], 0
    %13 = vsyncpa [#allocation6], 0
    %14 = vsyncpa [#allocation9], 0
    %15 = vsyncpa [#allocation12], 0
    %16 = vsyncpa [#allocation4], 0
    // Predicated region
    $region2: #{tpu_custom_call.1} parent=1 // pred_check
      _
    $region3: #{tpu_custom_call.1} parent=1 // pred_check_branch
      %18 = sbr.rel (0) target = $region5
    $region4: #{tpu_custom_call.1} parent=1 // pred_region
      %s20 = ssub.s32 128, 128
      %21 = vsyncadd [#allocation3], %s20
      %s23 = sshll.u32 [#allocation2], 4
      %s24 = int_to_ptr.vmem [resolvable:$true] %s23
      %26 = dma.hbm_to_vmem [thread:$0]  %s0, 128, %s24, [#allocation3]
    $region5: #{tpu_custom_call.1} parent=1 // pred_fallthru
      _
    // Predicated region
    $region6: #{tpu_custom_call.1} parent=1 // pred_check
      _
    $region7: #{tpu_custom_call.1} parent=1 // pred_check_branch
      %28 = sbr.rel (0) target = $region9
    $region8: #{tpu_custom_call.1} parent=1 // pred_region
      %s30 = ssub.s32 256, 256
      %31 = vsyncadd [#allocation6], %s30
      %s32 = sshll.u32 [#allocation5], 4
      %s33 = int_to_ptr.vmem [resolvable:$true] %s32
      %38 = dma.hbm_to_vmem [thread:$0]  %s1, 256, %s33, [#allocation6], 128, 128, 8
    $region9: #{tpu_custom_call.1} parent=1 // pred_fallthru
      _
    // Predicated region
    $region10: #{tpu_custom_call.1} parent=1 // pred_check
      _
    $region11: #{tpu_custom_call.1} parent=1 // pred_check_branch
      %40 = sbr.rel (0) target = $region13
    $region12: #{tpu_custom_call.1} parent=1 // pred_region
      %s42 = ssub.s32 128, 128
      %43 = vsyncadd [#allocation6], %s42
      %s45 = sshll.u32 [#allocation7], 4
      %s46 = int_to_ptr.vmem [resolvable:$true] %s45
      %48 = dma.hbm_to_vmem [thread:$0]  %s2, 128, %s46, [#allocation6]
    $region13: #{tpu_custom_call.1} parent=1 // pred_fallthru
      _
    // Predicated region
    $region14: #{tpu_custom_call.1} parent=1 // pred_check
      _
    $region15: #{tpu_custom_call.1} parent=1 // pred_check_branch
      %50 = sbr.rel (0) target = $region17
    $region16: #{tpu_custom_call.1} parent=1 // pred_region
      %s52 = ssub.s32 2048, 2048
      %53 = vsyncadd [#allocation9], %s52
      %s54 = sshll.u32 [#allocation8], 4
      %s55 = int_to_ptr.vmem [resolvable:$true] %s54
      %60 = dma.hbm_to_vmem [thread:$0]  %s3, 2048, %s55, [#allocation9], 128, 128, 8
    $region17: #{tpu_custom_call.1} parent=1 // pred_fallthru
      _
    // Predicated region
    $region18: #{tpu_custom_call.1} parent=1 // pred_check
      _
    $region19: #{tpu_custom_call.1} parent=1 // pred_check_branch
      %62 = sbr.rel (0) target = $region21
    $region20: #{tpu_custom_call.1} parent=1 // pred_region
      %s64 = ssub.s32 128, 128
      %65 = vsyncadd [#allocation9], %s64
      %s67 = sshll.u32 [#allocation10], 4
      %s68 = int_to_ptr.vmem [resolvable:$true] %s67
      %70 = dma.hbm_to_vmem [thread:$0]  %s4, 128, %s68, [#allocation9]
    $region21: #{tpu_custom_call.1} parent=1 // pred_fallthru
      _
    // Predicated region
    $region22: #{tpu_custom_call.1} parent=1 // pred_check
      _
    $region23: #{tpu_custom_call.1} parent=1 // pred_check_branch
      %72 = sbr.rel (0) target = $region25
    $region24: #{tpu_custom_call.1} parent=1 // pred_region
      %s74 = ssub.s32 2048, 2048
      %75 = vsyncadd [#allocation12], %s74
      %s76 = sshll.u32 [#allocation11], 4
      %s77 = int_to_ptr.vmem [resolvable:$true] %s76
      %82 = dma.hbm_to_vmem [thread:$0]  %s5, 2048, %s77, [#allocation12], 128, 128, 8
    $region25: #{tpu_custom_call.1} parent=1 // pred_fallthru
      _
    // Predicated region
    $region26: #{tpu_custom_call.1} parent=1 // pred_check
      _
    $region27: #{tpu_custom_call.1} parent=1 // pred_check_branch
      %84 = sbr.rel (0) target = $region29
    $region28: #{tpu_custom_call.1} parent=1 // pred_region
      _
    $region29: #{tpu_custom_call.1} parent=1 // pred_fallthru
      _
    // Predicated region
    $region30: #{tpu_custom_call.1} parent=1 // pred_check
      _
    $region31: #{tpu_custom_call.1} parent=1 // pred_check_branch
      %86 = sbr.rel (0) target = $region33
    $region32: #{tpu_custom_call.1} parent=1 // pred_region
      %87 = dma.done [#allocation3], 128
    $region33: #{tpu_custom_call.1} parent=1 // pred_fallthru
      _
    // Predicated region
    $region34: #{tpu_custom_call.1} parent=1 // pred_check
      _
    $region35: #{tpu_custom_call.1} parent=1 // pred_check_branch
      %89 = sbr.rel (0) target = $region37
    $region36: #{tpu_custom_call.1} parent=1 // pred_region
      %90 = dma.done [#allocation6], 256
    $region37: #{tpu_custom_call.1} parent=1 // pred_fallthru
      _
    // Predicated region
    $region38: #{tpu_custom_call.1} parent=1 // pred_check
      _
    $region39: #{tpu_custom_call.1} parent=1 // pred_check_branch
      %92 = sbr.rel (0) target = $region41
    $region40: #{tpu_custom_call.1} parent=1 // pred_region
      %93 = dma.done [#allocation6], 128
    $region41: #{tpu_custom_call.1} parent=1 // pred_fallthru
      _
    // Predicated region
    $region42: #{tpu_custom_call.1} parent=1 // pred_check
      _
    $region43: #{tpu_custom_call.1} parent=1 // pred_check_branch
      %95 = sbr.rel (0) target = $region45
    $region44: #{tpu_custom_call.1} parent=1 // pred_region
      %96 = dma.done [#allocation9], 2048
    $region45: #{tpu_custom_call.1} parent=1 // pred_fallthru
      _
    // Predicated region
    $region46: #{tpu_custom_call.1} parent=1 // pred_check
      _
    $region47: #{tpu_custom_call.1} parent=1 // pred_check_branch
      %98 = sbr.rel (0) target = $region49
    $region48: #{tpu_custom_call.1} parent=1 // pred_region
      %99 = dma.done [#allocation9], 128
    $region49: #{tpu_custom_call.1} parent=1 // pred_fallthru
      _
    // Predicated region
    $region50: #{tpu_custom_call.1} parent=1 // pred_check
      _
    $region51: #{tpu_custom_call.1} parent=1 // pred_check_branch
      %101 = sbr.rel (0) target = $region53
    $region52: #{tpu_custom_call.1} parent=1 // pred_region
      %102 = dma.done [#allocation12], 2048
    $region53: #{tpu_custom_call.1} parent=1 // pred_fallthru
      _
    %v103 = vld [vmem:[#allocation2] sm:$0xff]
    %v104 = vld [vmem:[#allocation7] sm:$0xff]
    %v105 = vld [vmem:[#allocation5] sm:$0xff]
    %v106 = vld [vmem:[#allocation5 + $0x8] sm:$0xff]
    %v107 = vlaneseq
    %v108 = vshrl.u32 %v107, 7
    %v109 = vsub.s32 0, %v108
    %v110 = vrot.slane %v104, %v109
    %vm111 = vcmask 130048
    %v113 = vsel %vm111, %v103, 0
    %115 = vmatprep.subr.mxu0 0.0
    %116 = vmatpush1.msra.mxu0 0.0
    %117 = vmatprep.subr.mxu0 0.0
    %118 = vmatpush1.msra.mxu0 0.0
    %119 = vmatprep.subr.mxu0 0.0
    %120 = vmatpush1.msra.mxu0 0.0
    %121 = vmatprep.subr.mxu0 0.0
    %122 = vmatpush1.msra.mxu0 0.0
    %123 = vmatprep.subr.mxu0 0.0
    %124 = vmatpush1.msra.mxu0 0.0
    %125 = vmatprep.subr.mxu0 0.0
    %126 = vmatpush1.msra.mxu0 0.0
    %127 = vmatprep.subr.mxu0 0.0
    %128 = vmatpush1.msra.mxu0 0.0
    %129 = vmatprep.subr.mxu0 0.0
    %130 = vmatpush1.msra.mxu0 0.0
    %131 = vmatprep.subr.mxu0 0.0
    %132 = vmatpush1.msra.mxu0 0.0
    %133 = vmatprep.subr.mxu0 0.0
    %134 = vmatpush1.msra.mxu0 0.0
    %135 = vmatprep.subr.mxu0 0.0
    %136 = vmatpush1.msra.mxu0 0.0
    %137 = vmatprep.subr.mxu0 0.0
    %138 = vmatpush1.msra.mxu0 0.0
    %139 = vmatprep.subr.mxu0 0.0
    %140 = vmatpush1.msra.mxu0 0.0
    %141 = vmatprep.subr.mxu0 0.0
    %142 = vmatpush1.msra.mxu0 0.0
    %143 = vmatprep.subr.mxu0 0.0
    %144 = vmatpush1.msra.mxu0 %v106
    %145 = vmatprep.subr.mxu0 0.0
    %146 = vmatpush1.msra.mxu0 %v105
    %147 = vmatprep.subr.mxu0 0.0
    %148 = vmatpush2.msra.mxu0 0.0
    %149 = vmatprep.subr.mxu0 0.0
    %150 = vmatpush2.msra.mxu0 0.0
    %151 = vmatprep.subr.mxu0 0.0
    %152 = vmatpush2.msra.mxu0 0.0
    %153 = vmatprep.subr.mxu0 0.0
    %154 = vmatpush2.msra.mxu0 0.0
    %155 = vmatprep.subr.mxu0 0.0
    %156 = vmatpush2.msra.mxu0 0.0
    %157 = vmatprep.subr.mxu0 0.0
    %158 = vmatpush2.msra.mxu0 0.0
    %159 = vmatprep.subr.mxu0 0.0
    %160 = vmatpush2.msra.mxu0 0.0
    %161 = vmatprep.subr.mxu0 0.0
    %162 = vmatpush2.msra.mxu0 0.0
    %163 = vmatprep.subr.mxu0 0.0
    %164 = vmatpush2.msra.mxu0 0.0
    %165 = vmatprep.subr.mxu0 0.0
    %166 = vmatpush2.msra.mxu0 0.0
    %167 = vmatprep.subr.mxu0 0.0
    %168 = vmatpush2.msra.mxu0 0.0
    %169 = vmatprep.subr.mxu0 0.0
    %170 = vmatpush2.msra.mxu0 0.0
    %171 = vmatprep.subr.mxu0 0.0
    %172 = vmatpush2.msra.mxu0 0.0
    %173 = vmatprep.subr.mxu0 0.0
    %174 = vmatpush2.msra.mxu0 0.0
    %175 = vmatprep.subr.mxu0 0.0
    %176 = vmatpush2.msra.mxu0 0.0
    %177 = vmatprep.subr.mxu0 0.0
    %178 = vmatpush2.msra.mxu0 0.0
    %179 = vmatprep.mubr.f32.mxu0 0.0
    %180 = vmatmul.mubr.f32.gmra.mxu0 %v113
    %v181 = vpop.f32.mrf.mxu0
    %v182 = vadd.f32 %v110, %v181
    %v183 = vpop.f32.mrf.mxu0
    %184 = vdwg.mxu0
    %185 = vadd.xlane.f32.xlu0 %v182
    %v186 = vpop.xlane.xlu0 %185
    %v187 = vmul.f32 %v182, %v182
    %188 = vadd.xlane.f32.xlu0 %v187
    %v189 = vpop.xlane.xlu0 %188
    %v190 = vmul.f32 %v186, 0.03125
    %v191 = vmul.f32 %v189, 0.03125
    %v192 = vmul.f32 %v190, %v190
    %v193 = vsub.f32 %v191, %v192
    %v194 = vmax.f32 %v193, 0.0
    %v195 = vsub.f32 %v182, %v190
    %v196 = vadd.f32 %v194, 1e-05
    %v197 = vrsqrt.pop %v196
    %v198 = vmul.f32 %v195, %v197
    %v199 = vlaneseq
    %v200 = vshrl.u32 %v199, 7
    %v201 = vsub.s32 1, %v200
    %v202 = vrot.slane %v104, %v201
    %v203 = vmul.f32 %v198, %v202
    %v204 = vlaneseq
    %v205 = vshrl.u32 %v204, 7
    %v206 = vsub.s32 2, %v205
    %v207 = vrot.slane %v104, %v206
    %v208 = vadd.f32 %v203, %v207
    %v209 = vmax.f32 %v208, 0.0
    %v210 = vld [vmem:[#allocation10] sm:$0xff]
    %v211 = vld [vmem:[#allocation8] sm:$0xff]
    %v212 = vld [vmem:[#allocation8 + $0x8] sm:$0xff]
    %v213 = vld [vmem:[#allocation8 + $0x10] sm:$0xff]
    %v214 = vld [vmem:[#allocation8 + $0x18] sm:$0xff]
    %v215 = vld [vmem:[#allocation8 + $0x20] sm:$0xff]
    %v216 = vld [vmem:[#allocation8 + $0x28] sm:$0xff]
    %v217 = vld [vmem:[#allocation8 + $0x30] sm:$0xff]
    %v218 = vld [vmem:[#allocation8 + $0x38] sm:$0xff]
    %v219 = vld [vmem:[#allocation8 + $0x40] sm:$0xff]
    %v220 = vld [vmem:[#allocation8 + $0x48] sm:$0xff]
    %v221 = vld [vmem:[#allocation8 + $0x50] sm:$0xff]
    %v222 = vld [vmem:[#allocation8 + $0x58] sm:$0xff]
    %v223 = vld [vmem:[#allocation8 + $0x60] sm:$0xff]
    %v224 = vld [vmem:[#allocation8 + $0x68] sm:$0xff]
    %v225 = vld [vmem:[#allocation8 + $0x70] sm:$0xff]
    %v226 = vld [vmem:[#allocation8 + $0x78] sm:$0xff]
    %v227 = vlaneseq
    %v228 = vshrl.u32 %v227, 7
    %v229 = vsub.s32 0, %v228
    %v230 = vrot.slane %v210, %v229
    %231 = vmatprep.subr.mxu0 0.0
    %232 = vmatpush1.msra.mxu0 %v226
    %233 = vmatprep.subr.mxu0 0.0
    %234 = vmatpush1.msra.mxu0 %v225
    %235 = vmatprep.subr.mxu0 0.0
    %236 = vmatpush1.msra.mxu0 %v224
    %237 = vmatprep.subr.mxu0 0.0
    %238 = vmatpush1.msra.mxu0 %v223
    %239 = vmatprep.subr.mxu0 0.0
    %240 = vmatpush1.msra.mxu0 %v222
    %241 = vmatprep.subr.mxu0 0.0
    %242 = vmatpush1.msra.mxu0 %v221
    %243 = vmatprep.subr.mxu0 0.0
    %244 = vmatpush1.msra.mxu0 %v220
    %245 = vmatprep.subr.mxu0 0.0
    %246 = vmatpush1.msra.mxu0 %v219
    %247 = vmatprep.subr.mxu0 0.0
    %248 = vmatpush1.msra.mxu0 %v218
    %249 = vmatprep.subr.mxu0 0.0
    %250 = vmatpush1.msra.mxu0 %v217
    %251 = vmatprep.subr.mxu0 0.0
    %252 = vmatpush1.msra.mxu0 %v216
    %253 = vmatprep.subr.mxu0 0.0
    %254 = vmatpush1.msra.mxu0 %v215
    %255 = vmatprep.subr.mxu0 0.0
    %256 = vmatpush1.msra.mxu0 %v214
    %257 = vmatprep.subr.mxu0 0.0
    %258 = vmatpush1.msra.mxu0 %v213
    %259 = vmatprep.subr.mxu0 0.0
    %260 = vmatpush1.msra.mxu0 %v212
    %261 = vmatprep.subr.mxu0 0.0
    %262 = vmatpush1.msra.mxu0 %v211
    %263 = vmatprep.subr.mxu0 0.0
    %264 = vmatpush2.msra.mxu0 0.0
    %265 = vmatprep.subr.mxu0 0.0
    %266 = vmatpush2.msra.mxu0 0.0
    %267 = vmatprep.subr.mxu0 0.0
    %268 = vmatpush2.msra.mxu0 0.0
    %269 = vmatprep.subr.mxu0 0.0
    %270 = vmatpush2.msra.mxu0 0.0
    %271 = vmatprep.subr.mxu0 0.0
    %272 = vmatpush2.msra.mxu0 0.0
    %273 = vmatprep.subr.mxu0 0.0
    %274 = vmatpush2.msra.mxu0 0.0
    %275 = vmatprep.subr.mxu0 0.0
    %276 = vmatpush2.msra.mxu0 0.0
    %277 = vmatprep.subr.mxu0 0.0
    %278 = vmatpush2.msra.mxu0 0.0
    %279 = vmatprep.subr.mxu0 0.0
    %280 = vmatpush2.msra.mxu0 0.0
    %281 = vmatprep.subr.mxu0 0.0
    %282 = vmatpush2.msra.mxu0 0.0
    %283 = vmatprep.subr.mxu0 0.0
    %284 = vmatpush2.msra.mxu0 0.0
    %285 = vmatprep.subr.mxu0 0.0
    %286 = vmatpush2.msra.mxu0 0.0
    %287 = vmatprep.subr.mxu0 0.0
    %288 = vmatpush2.msra.mxu0 0.0
    %289 = vmatprep.subr.mxu0 0.0
    %290 = vmatpush2.msra.mxu0 0.0
    %291 = vmatprep.subr.mxu0 0.0
    %292 = vmatpush2.msra.mxu0 0.0
    %293 = vmatprep.subr.mxu0 0.0
    %294 = vmatpush2.msra.mxu0 0.0
    %295 = vmatprep.mubr.f32.mxu0 0.0
    %296 = vmatmul.mubr.f32.gmra.mxu0 %v209
    %v297 = vpop.f32.mrf.mxu0
    %v298 = vadd.f32 %v230, %v297
    %v299 = vpop.f32.mrf.mxu0
    %300 = vdwg.mxu0
    %301 = vadd.xlane.f32.xlu0 %v298
    %v302 = vpop.xlane.xlu0 %301
    %v303 = vmul.f32 %v298, %v298
    %304 = vadd.xlane.f32.xlu0 %v303
    %v305 = vpop.xlane.xlu0 %304
    %v306 = vmul.f32 %v302, 0.03125
    %v307 = vmul.f32 %v305, 0.03125
    %v308 = vmul.f32 %v306, %v306
    %v309 = vsub.f32 %v307, %v308
    %v310 = vmax.f32 %v309, 0.0
    %v311 = vsub.f32 %v298, %v306
    %v312 = vadd.f32 %v310, 1e-05
    %v313 = vrsqrt.pop %v312
    %v314 = vmul.f32 %v311, %v313
    %v315 = vlaneseq
    %v316 = vshrl.u32 %v315, 7
    %v317 = vsub.s32 1, %v316
    %v318 = vrot.slane %v210, %v317
    %v319 = vmul.f32 %v314, %v318
    %v320 = vlaneseq
    %v321 = vshrl.u32 %v320, 7
    %v322 = vsub.s32 2, %v321
    %v323 = vrot.slane %v210, %v322
    %v324 = vadd.f32 %v319, %v323
    %v325 = vmax.f32 %v324, 0.0
    %v326 = vld [vmem:[#allocation11] sm:$0xff]
    %v327 = vld [vmem:[#allocation11 + $0x8] sm:$0xff]
    %v328 = vld [vmem:[#allocation11 + $0x10] sm:$0xff]
    %v329 = vld [vmem:[#allocation11 + $0x18] sm:$0xff]
    %v330 = vld [vmem:[#allocation11 + $0x20] sm:$0xff]
    %v331 = vld [vmem:[#allocation11 + $0x28] sm:$0xff]
    %v332 = vld [vmem:[#allocation11 + $0x30] sm:$0xff]
    %v333 = vld [vmem:[#allocation11 + $0x38] sm:$0xff]
    %v334 = vld [vmem:[#allocation11 + $0x40] sm:$0xff]
    %v335 = vld [vmem:[#allocation11 + $0x48] sm:$0xff]
    %v336 = vld [vmem:[#allocation11 + $0x50] sm:$0xff]
    %v337 = vld [vmem:[#allocation11 + $0x58] sm:$0xff]
    %v338 = vld [vmem:[#allocation11 + $0x60] sm:$0xff]
    %v339 = vld [vmem:[#allocation11 + $0x68] sm:$0xff]
    %v340 = vld [vmem:[#allocation11 + $0x70] sm:$0xff]
    %v341 = vld [vmem:[#allocation11 + $0x78] sm:$0xff]
    %v342 = vld [vmem:[%s6] sm:$0x1]
    %v343 = vlaneseq
    %v344 = vshrl.u32 %v343, 7
    %v345 = vsub.s32 0, %v344
    %v346 = vrot.slane %v342, %v345
    %347 = vmatprep.subr.mxu0 0.0
    %348 = vmatpush1.msra.mxu0 %v341
    %349 = vmatprep.subr.mxu0 0.0
    %350 = vmatpush1.msra.mxu0 %v340
    %351 = vmatprep.subr.mxu0 0.0
    %352 = vmatpush1.msra.mxu0 %v339
    %353 = vmatprep.subr.mxu0 0.0
    %354 = vmatpush1.msra.mxu0 %v338
    %355 = vmatprep.subr.mxu0 0.0
    %356 = vmatpush1.msra.mxu0 %v337
    %357 = vmatprep.subr.mxu0 0.0
    %358 = vmatpush1.msra.mxu0 %v336
    %359 = vmatprep.subr.mxu0 0.0
    %360 = vmatpush1.msra.mxu0 %v335
    %361 = vmatprep.subr.mxu0 0.0
    %362 = vmatpush1.msra.mxu0 %v334
    %363 = vmatprep.subr.mxu0 0.0
    %364 = vmatpush1.msra.mxu0 %v333
    %365 = vmatprep.subr.mxu0 0.0
    %366 = vmatpush1.msra.mxu0 %v332
    %367 = vmatprep.subr.mxu0 0.0
    %368 = vmatpush1.msra.mxu0 %v331
    %369 = vmatprep.subr.mxu0 0.0
    %370 = vmatpush1.msra.mxu0 %v330
    %371 = vmatprep.subr.mxu0 0.0
    %372 = vmatpush1.msra.mxu0 %v329
    %373 = vmatprep.subr.mxu0 0.0
    %374 = vmatpush1.msra.mxu0 %v328
    %375 = vmatprep.subr.mxu0 0.0
    %376 = vmatpush1.msra.mxu0 %v327
    %377 = vmatprep.subr.mxu0 0.0
    %378 = vmatpush1.msra.mxu0 %v326
    %379 = vmatprep.subr.mxu0 0.0
    %380 = vmatpush2.msra.mxu0 0.0
    %381 = vmatprep.subr.mxu0 0.0
    %382 = vmatpush2.msra.mxu0 0.0
    %383 = vmatprep.subr.mxu0 0.0
    %384 = vmatpush2.msra.mxu0 0.0
    %385 = vmatprep.subr.mxu0 0.0
    %386 = vmatpush2.msra.mxu0 0.0
    %387 = vmatprep.subr.mxu0 0.0
    %388 = vmatpush2.msra.mxu0 0.0
    %389 = vmatprep.subr.mxu0 0.0
    %390 = vmatpush2.msra.mxu0 0.0
    %391 = vmatprep.subr.mxu0 0.0
    %392 = vmatpush2.msra.mxu0 0.0
    %393 = vmatprep.subr.mxu0 0.0
    %394 = vmatpush2.msra.mxu0 0.0
    %395 = vmatprep.subr.mxu0 0.0
    %396 = vmatpush2.msra.mxu0 0.0
    %397 = vmatprep.subr.mxu0 0.0
    %398 = vmatpush2.msra.mxu0 0.0
    %399 = vmatprep.subr.mxu0 0.0
    %400 = vmatpush2.msra.mxu0 0.0
    %401 = vmatprep.subr.mxu0 0.0
    %402 = vmatpush2.msra.mxu0 0.0
    %403 = vmatprep.subr.mxu0 0.0
    %404 = vmatpush2.msra.mxu0 0.0
    %405 = vmatprep.subr.mxu0 0.0
    %406 = vmatpush2.msra.mxu0 0.0
    %407 = vmatprep.subr.mxu0 0.0
    %408 = vmatpush2.msra.mxu0 0.0
    %409 = vmatprep.subr.mxu0 0.0
    %410 = vmatpush2.msra.mxu0 0.0
    %411 = vmatprep.mubr.f32.mxu0 0.0
    %412 = vmatmul.mubr.f32.gmra.mxu0 %v325
    %v413 = vpop.f32.mrf.mxu0
    %v414 = vadd.f32 %v346, %v413
    %v415 = vpop.f32.mrf.mxu0
    %416 = vdwg.mxu0
    %v417 = vtanh.pop %v414
    %418 = vst [vmem:[#allocation13] sm:$0xff] %v417
    // Predicated region
    $region54: #{tpu_custom_call.1} parent=1 // pred_check
      _
    $region55: #{tpu_custom_call.1} parent=1 // pred_check_branch
      %420 = sbr.rel (0) target = $region57
    $region56: #{tpu_custom_call.1} parent=1 // pred_region
      %s422 = ssub.s32 128, 128
      %423 = vsyncadd [#allocation4], %s422
      %s425 = sshll.u32 [#allocation13], 4
      %s426 = int_to_ptr.vmem [resolvable:$true] %s425
      %428 = dma.vmem_to_hbm [thread:$0]  %s426, 128, %s7, [#allocation4]
    $region57: #{tpu_custom_call.1} parent=1 // pred_fallthru
      _
    // Predicated region
    $region58: #{tpu_custom_call.1} parent=1 // pred_check
      _
    $region59: #{tpu_custom_call.1} parent=1 // pred_check_branch
      %430 = sbr.rel (0) target = $region61
    $region60: #{tpu_custom_call.1} parent=1 // pred_region
      %431 = dma.done [#allocation4], 128
    $region61: #{tpu_custom_call.1} parent=1 // pred_fallthru
      _
    %432 = vsyncpa [#allocation3], 1
    %433 = vsyncpa [#allocation6], 1
    %434 = vsyncpa [#allocation9], 1
    %435 = vsyncpa [#allocation12], 1
    %436 = vsyncpa [#allocation4], 1

// kernel: tpu_custom_call.1
$region0: #{tpu_custom_call.1}
  #allocation0 [shape = 'u32[]', space=smem, size = 0x4, offset = 0x4, fixed_abs, tag = 'smem constant byte address 0x4 - core index']
  #allocation1 [shape = 'u32[144,128]{1,0:T(1,128)}', space=vmem, size = 0x12000, scoped, tag = 'internal scratch']
  %s0 = inlined_call_operand.hbm [shape: f32[8,16], index: 0, kind: input, shape index: {}]
  %s1 = inlined_call_operand.hbm [shape: f32[16,128], index: 1, kind: input, shape index: {}]
  %s2 = inlined_call_operand.hbm [shape: f32[8,128], index: 2, kind: input, shape index: {}]
  %s3 = inlined_call_operand.hbm [shape: f32[128,128], index: 3, kind: input, shape index: {}]
  %s4 = inlined_call_operand.hbm [shape: f32[8,128], index: 4, kind: input, shape index: {}]
  %s5 = inlined_call_operand.hbm [shape: f32[128,128], index: 5, kind: input, shape index: {}]
  %s6 = inlined_call_operand.vmem [shape: f32[8,128], index: 6, kind: input, shape index: {}]
  %s7 = inlined_call_operand.hbm [shape: f32[8,128], index: 7, kind: output, shape index: {}]
  %s8 = sld [smem:[#allocation0]]
  $region62: #{tpu_custom_call.1} parent=0
    _
  %s10 = ssub.s32 1, %s8
  %s11 = scalar_select 0, %s10, %s8
  $region1: #{tpu_custom_call.1} parent=0
    #allocation2 [shape = 'u8[4096]{0}', space=vmem, size = 0x1000, scoped, tag = 'input window, operand 0, single buffered']
    #allocation3 [shape = 's32[1]{0}', space=sflag, size = 0x4, scoped, tag = 'scoped memory for tpu_custom_call.1']
    #allocation4 [shape = 's32[1]{0}', space=sflag, size = 0x4, scoped, tag = 'scoped memory for tpu_custom_call.1']
    #allocation5 [shape = 'u8[8192]{0}', space=vmem, size = 0x2000, scoped, tag = 'input window, operand 1, single buffered']
    #allocation6 [shape = 's32[1]{0}', space=sflag, size = 0x4, scoped, tag = 'scoped memory for tpu_custom_call.1']
    #allocation7 [shape = 'u8[4096]{0}', space=vmem, size = 0x1000, scoped, tag = 'input window, operand 2, single buffered']
    #allocation8 [shape = 'u8[65536]{0}', space=vmem, size = 0x10000, scoped, tag = 'input window, operand 3, single buffered']
    #allocation9 [shape = 's32[1]{0}', space=sflag, size = 0x4, scoped, tag = 'scoped memory for tpu_custom_call.1']
    #allocation10 [shape = 'u8[4096]{0}', space=vmem, size = 0x1000, scoped, tag = 'input window, operand 4, single buffered']
    #allocation11 [shape = 'u8[65536]{0}', space=vmem, size = 0x10000, scoped, tag = 'input window, operand 5, single buffered']
    #allocation12 [shape = 's32[1]{0}', space=sflag, size = 0x4, scoped, tag = 'scoped memory for tpu_custom_call.1']
    #allocation13 [shape = 'u8[4096]{0}', space=vmem, size = 0x1000, scoped, tag = 'output window, operand 0, single buffered']
    %12 = vsyncpa [#allocation3], 0
    %13 = vsyncpa [#allocation6], 0
    %14 = vsyncpa [#allocation9], 0
    %15 = vsyncpa [#allocation12], 0
    %16 = vsyncpa [#allocation4], 0
    // Predicated region
    $region2: #{tpu_custom_call.1} parent=1 // pred_check
      _
    $region3: #{tpu_custom_call.1} parent=1 // pred_check_branch
      %18 = sbr.rel (0) target = $region5
    $region4: #{tpu_custom_call.1} parent=1 // pred_region
      %s20 = ssub.s32 128, 128
      %21 = vsyncadd [#allocation3], %s20
      %s23 = sshll.u32 [#allocation2], 4
      %s24 = int_to_ptr.vmem [resolvable:$true] %s23
      %26 = dma.hbm_to_vmem [thread:$0]  %s0, 128, %s24, [#allocation3]
    $region5: #{tpu_custom_call.1} parent=1 // pred_fallthru
      _
    // Predicated region
    $region6: #{tpu_custom_call.1} parent=1 // pred_check
      _
    $region7: #{tpu_custom_call.1} parent=1 // pred_check_branch
      %28 = sbr.rel (0) target = $region9
    $region8: #{tpu_custom_call.1} parent=1 // pred_region
      %s30 = ssub.s32 256, 256
      %31 = vsyncadd [#allocation6], %s30
      %s32 = sshll.u32 [#allocation5], 4
      %s33 = int_to_ptr.vmem [resolvable:$true] %s32
      %38 = dma.hbm_to_vmem [thread:$0]  %s1, 256, %s33, [#allocation6], 128, 128, 8
    $region9: #{tpu_custom_call.1} parent=1 // pred_fallthru
      _
    // Predicated region
    $region10: #{tpu_custom_call.1} parent=1 // pred_check
      _
    $region11: #{tpu_custom_call.1} parent=1 // pred_check_branch
      %40 = sbr.rel (0) target = $region13
    $region12: #{tpu_custom_call.1} parent=1 // pred_region
      %s42 = ssub.s32 128, 128
      %43 = vsyncadd [#allocation6], %s42
      %s45 = sshll.u32 [#allocation7], 4
      %s46 = int_to_ptr.vmem [resolvable:$true] %s45
      %48 = dma.hbm_to_vmem [thread:$0]  %s2, 128, %s46, [#allocation6]
    $region13: #{tpu_custom_call.1} parent=1 // pred_fallthru
      _
    // Predicated region
    $region14: #{tpu_custom_call.1} parent=1 // pred_check
      _
    $region15: #{tpu_custom_call.1} parent=1 // pred_check_branch
      %50 = sbr.rel (0) target = $region17
    $region16: #{tpu_custom_call.1} parent=1 // pred_region
      %s52 = ssub.s32 2048, 2048
      %53 = vsyncadd [#allocation9], %s52
      %s54 = sshll.u32 [#allocation8], 4
      %s55 = int_to_ptr.vmem [resolvable:$true] %s54
      %60 = dma.hbm_to_vmem [thread:$0]  %s3, 2048, %s55, [#allocation9], 128, 128, 8
    $region17: #{tpu_custom_call.1} parent=1 // pred_fallthru
      _
    // Predicated region
    $region18: #{tpu_custom_call.1} parent=1 // pred_check
      _
    $region19: #{tpu_custom_call.1} parent=1 // pred_check_branch
      %62 = sbr.rel (0) target = $region21
    $region20: #{tpu_custom_call.1} parent=1 // pred_region
      %s64 = ssub.s32 128, 128
      %65 = vsyncadd [#allocation9], %s64
      %s67 = sshll.u32 [#allocation10], 4
      %s68 = int_to_ptr.vmem [resolvable:$true] %s67
      %70 = dma.hbm_to_vmem [thread:$0]  %s4, 128, %s68, [#allocation9]
    $region21: #{tpu_custom_call.1} parent=1 // pred_fallthru
      _
    // Predicated region
    $region22: #{tpu_custom_call.1} parent=1 // pred_check
      _
    $region23: #{tpu_custom_call.1} parent=1 // pred_check_branch
      %72 = sbr.rel (0) target = $region25
    $region24: #{tpu_custom_call.1} parent=1 // pred_region
      %s74 = ssub.s32 2048, 2048
      %75 = vsyncadd [#allocation12], %s74
      %s76 = sshll.u32 [#allocation11], 4
      %s77 = int_to_ptr.vmem [resolvable:$true] %s76
      %82 = dma.hbm_to_vmem [thread:$0]  %s5, 2048, %s77, [#allocation12], 128, 128, 8
    $region25: #{tpu_custom_call.1} parent=1 // pred_fallthru
      _
    // Predicated region
    $region26: #{tpu_custom_call.1} parent=1 // pred_check
      _
    $region27: #{tpu_custom_call.1} parent=1 // pred_check_branch
      %84 = sbr.rel (0) target = $region29
    $region28: #{tpu_custom_call.1} parent=1 // pred_region
      _
    $region29: #{tpu_custom_call.1} parent=1 // pred_fallthru
      _
    // Predicated region
    $region30: #{tpu_custom_call.1} parent=1 // pred_check
      _
    $region31: #{tpu_custom_call.1} parent=1 // pred_check_branch
      %86 = sbr.rel (0) target = $region33
    $region32: #{tpu_custom_call.1} parent=1 // pred_region
      %87 = dma.done [#allocation3], 128
    $region33: #{tpu_custom_call.1} parent=1 // pred_fallthru
      _
    // Predicated region
    $region34: #{tpu_custom_call.1} parent=1 // pred_check
      _
    $region35: #{tpu_custom_call.1} parent=1 // pred_check_branch
      %89 = sbr.rel (0) target = $region37
    $region36: #{tpu_custom_call.1} parent=1 // pred_region
      %90 = dma.done [#allocation6], 256
    $region37: #{tpu_custom_call.1} parent=1 // pred_fallthru
      _
    // Predicated region
    $region38: #{tpu_custom_call.1} parent=1 // pred_check
      _
    $region39: #{tpu_custom_call.1} parent=1 // pred_check_branch
      %92 = sbr.rel (0) target = $region41
    $region40: #{tpu_custom_call.1} parent=1 // pred_region
      %93 = dma.done [#allocation6], 128
    $region41: #{tpu_custom_call.1} parent=1 // pred_fallthru
      _
    // Predicated region
    $region42: #{tpu_custom_call.1} parent=1 // pred_check
      _
    $region43: #{tpu_custom_call.1} parent=1 // pred_check_branch
      %95 = sbr.rel (0) target = $region45
    $region44: #{tpu_custom_call.1} parent=1 // pred_region
      %96 = dma.done [#allocation9], 2048
    $region45: #{tpu_custom_call.1} parent=1 // pred_fallthru
      _
    // Predicated region
    $region46: #{tpu_custom_call.1} parent=1 // pred_check
      _
    $region47: #{tpu_custom_call.1} parent=1 // pred_check_branch
      %98 = sbr.rel (0) target = $region49
    $region48: #{tpu_custom_call.1} parent=1 // pred_region
      %99 = dma.done [#allocation9], 128
    $region49: #{tpu_custom_call.1} parent=1 // pred_fallthru
      _
    // Predicated region
    $region50: #{tpu_custom_call.1} parent=1 // pred_check
      _
    $region51: #{tpu_custom_call.1} parent=1 // pred_check_branch
      %101 = sbr.rel (0) target = $region53
    $region52: #{tpu_custom_call.1} parent=1 // pred_region
      %102 = dma.done [#allocation12], 2048
    $region53: #{tpu_custom_call.1} parent=1 // pred_fallthru
      _
    %v103 = vld [vmem:[#allocation2] sm:$0xff]
    %v104 = vld [vmem:[#allocation7] sm:$0xff]
    %v105 = vld [vmem:[#allocation5] sm:$0xff]
    %v106 = vld [vmem:[#allocation5 + $0x8] sm:$0xff]
    %v107 = vlaneseq
    %v108 = vshrl.u32 %v107, 7
    %v109 = vsub.s32 0, %v108
    %v110 = vrot.slane %v104, %v109
    %vm111 = vcmask 130048
    %v113 = vsel %vm111, %v103, 0
    %115 = vmatprep.subr.mxu0 0.0
    %116 = vmatpush1.msra.mxu0 0.0
    %117 = vmatprep.subr.mxu0 0.0
    %118 = vmatpush1.msra.mxu0 0.0
    %119 = vmatprep.subr.mxu0 0.0
    %120 = vmatpush1.msra.mxu0 0.0
    %121 = vmatprep.subr.mxu0 0.0
    %122 = vmatpush1.msra.mxu0 0.0
    %123 = vmatprep.subr.mxu0 0.0
    %124 = vmatpush1.msra.mxu0 0.0
    %125 = vmatprep.subr.mxu0 0.0
    %126 = vmatpush1.msra.mxu0 0.0
    %127 = vmatprep.subr.mxu0 0.0
    %128 = vmatpush1.msra.mxu0 0.0
    %129 = vmatprep.subr.mxu0 0.0
    %130 = vmatpush1.msra.mxu0 0.0
    %131 = vmatprep.subr.mxu0 0.0
    %132 = vmatpush1.msra.mxu0 0.0
    %133 = vmatprep.subr.mxu0 0.0
    %134 = vmatpush1.msra.mxu0 0.0
    %135 = vmatprep.subr.mxu0 0.0
    %136 = vmatpush1.msra.mxu0 0.0
    %137 = vmatprep.subr.mxu0 0.0
    %138 = vmatpush1.msra.mxu0 0.0
    %139 = vmatprep.subr.mxu0 0.0
    %140 = vmatpush1.msra.mxu0 0.0
    %141 = vmatprep.subr.mxu0 0.0
    %142 = vmatpush1.msra.mxu0 0.0
    %143 = vmatprep.subr.mxu0 0.0
    %144 = vmatpush1.msra.mxu0 %v106
    %145 = vmatprep.subr.mxu0 0.0
    %146 = vmatpush1.msra.mxu0 %v105
    %147 = vmatprep.subr.mxu0 0.0
    %148 = vmatpush2.msra.mxu0 0.0
    %149 = vmatprep.subr.mxu0 0.0
    %150 = vmatpush2.msra.mxu0 0.0
    %151 = vmatprep.subr.mxu0 0.0
    %152 = vmatpush2.msra.mxu0 0.0
    %153 = vmatprep.subr.mxu0 0.0
    %154 = vmatpush2.msra.mxu0 0.0
    %155 = vmatprep.subr.mxu0 0.0
    %156 = vmatpush2.msra.mxu0 0.0
    %157 = vmatprep.subr.mxu0 0.0
    %158 = vmatpush2.msra.mxu0 0.0
    %159 = vmatprep.subr.mxu0 0.0
    %160 = vmatpush2.msra.mxu0 0.0
    %161 = vmatprep.subr.mxu0 0.0
    %162 = vmatpush2.msra.mxu0 0.0
    %163 = vmatprep.subr.mxu0 0.0
    %164 = vmatpush2.msra.mxu0 0.0
    %165 = vmatprep.subr.mxu0 0.0
    %166 = vmatpush2.msra.mxu0 0.0
    %167 = vmatprep.subr.mxu0 0.0
    %168 = vmatpush2.msra.mxu0 0.0
    %169 = vmatprep.subr.mxu0 0.0
    %170 = vmatpush2.msra.mxu0 0.0
    %171 = vmatprep.subr.mxu0 0.0
    %172 = vmatpush2.msra.mxu0 0.0
    %173 = vmatprep.subr.mxu0 0.0
    %174 = vmatpush2.msra.mxu0 0.0
    %175 = vmatprep.subr.mxu0 0.0
    %176 = vmatpush2.msra.mxu0 0.0
    %177 = vmatprep.subr.mxu0 0.0
    %178 = vmatpush2.msra.mxu0 0.0
    %179 = vmatprep.mubr.f32.mxu0 0.0
    %180 = vmatmul.mubr.f32.gmra.mxu0 %v113
    %v181 = vpop.f32.mrf.mxu0
    %v182 = vadd.f32 %v110, %v181
    %v183 = vpop.f32.mrf.mxu0
    %184 = vdwg.mxu0
    %185 = vadd.xlane.f32.xlu0 %v182
    %v186 = vpop.xlane.xlu0 %185
    %v187 = vmul.f32 %v182, %v182
    %188 = vadd.xlane.f32.xlu0 %v187
    %v189 = vpop.xlane.xlu0 %188
    %v190 = vmul.f32 %v186, 0.03125
    %v191 = vmul.f32 %v189, 0.03125
    %v192 = vmul.f32 %v190, %v190
    %v193 = vsub.f32 %v191, %v192
    %v194 = vmax.f32 %v193, 0.0
    %v195 = vsub.f32 %v182, %v190
    %v196 = vadd.f32 %v194, 1e-05
    %v197 = vrsqrt.pop %v196
    %v198 = vmul.f32 %v195, %v197
    %v199 = vlaneseq
    %v200 = vshrl.u32 %v199, 7
    %v201 = vsub.s32 1, %v200
    %v202 = vrot.slane %v104, %v201
    %v203 = vmul.f32 %v198, %v202
    %v204 = vlaneseq
    %v205 = vshrl.u32 %v204, 7
    %v206 = vsub.s32 2, %v205
    %v207 = vrot.slane %v104, %v206
    %v208 = vadd.f32 %v203, %v207
    %v209 = vmax.f32 %v208, 0.0
    %v210 = vld [vmem:[#allocation10] sm:$0xff]
    %v211 = vld [vmem:[#allocation8] sm:$0xff]
    %v212 = vld [vmem:[#allocation8 + $0x8] sm:$0xff]
    %v213 = vld [vmem:[#allocation8 + $0x10] sm:$0xff]
    %v214 = vld [vmem:[#allocation8 + $0x18] sm:$0xff]
    %v215 = vld [vmem:[#allocation8 + $0x20] sm:$0xff]
    %v216 = vld [vmem:[#allocation8 + $0x28] sm:$0xff]
    %v217 = vld [vmem:[#allocation8 + $0x30] sm:$0xff]
    %v218 = vld [vmem:[#allocation8 + $0x38] sm:$0xff]
    %v219 = vld [vmem:[#allocation8 + $0x40] sm:$0xff]
    %v220 = vld [vmem:[#allocation8 + $0x48] sm:$0xff]
    %v221 = vld [vmem:[#allocation8 + $0x50] sm:$0xff]
    %v222 = vld [vmem:[#allocation8 + $0x58] sm:$0xff]
    %v223 = vld [vmem:[#allocation8 + $0x60] sm:$0xff]
    %v224 = vld [vmem:[#allocation8 + $0x68] sm:$0xff]
    %v225 = vld [vmem:[#allocation8 + $0x70] sm:$0xff]
    %v226 = vld [vmem:[#allocation8 + $0x78] sm:$0xff]
    %v227 = vlaneseq
    %v228 = vshrl.u32 %v227, 7
    %v229 = vsub.s32 0, %v228
    %v230 = vrot.slane %v210, %v229
    %231 = vmatprep.subr.mxu0 0.0
    %232 = vmatpush1.msra.mxu0 %v226
    %233 = vmatprep.subr.mxu0 0.0
    %234 = vmatpush1.msra.mxu0 %v225
    %235 = vmatprep.subr.mxu0 0.0
    %236 = vmatpush1.msra.mxu0 %v224
    %237 = vmatprep.subr.mxu0 0.0
    %238 = vmatpush1.msra.mxu0 %v223
    %239 = vmatprep.subr.mxu0 0.0
    %240 = vmatpush1.msra.mxu0 %v222
    %241 = vmatprep.subr.mxu0 0.0
    %242 = vmatpush1.msra.mxu0 %v221
    %243 = vmatprep.subr.mxu0 0.0
    %244 = vmatpush1.msra.mxu0 %v220
    %245 = vmatprep.subr.mxu0 0.0
    %246 = vmatpush1.msra.mxu0 %v219
    %247 = vmatprep.subr.mxu0 0.0
    %248 = vmatpush1.msra.mxu0 %v218
    %249 = vmatprep.subr.mxu0 0.0
    %250 = vmatpush1.msra.mxu0 %v217
    %251 = vmatprep.subr.mxu0 0.0
    %252 = vmatpush1.msra.mxu0 %v216
    %253 = vmatprep.subr.mxu0 0.0
    %254 = vmatpush1.msra.mxu0 %v215
    %255 = vmatprep.subr.mxu0 0.0
    %256 = vmatpush1.msra.mxu0 %v214
    %257 = vmatprep.subr.mxu0 0.0
    %258 = vmatpush1.msra.mxu0 %v213
    %259 = vmatprep.subr.mxu0 0.0
    %260 = vmatpush1.msra.mxu0 %v212
    %261 = vmatprep.subr.mxu0 0.0
    %262 = vmatpush1.msra.mxu0 %v211
    %263 = vmatprep.subr.mxu0 0.0
    %264 = vmatpush2.msra.mxu0 0.0
    %265 = vmatprep.subr.mxu0 0.0
    %266 = vmatpush2.msra.mxu0 0.0
    %267 = vmatprep.subr.mxu0 0.0
    %268 = vmatpush2.msra.mxu0 0.0
    %269 = vmatprep.subr.mxu0 0.0
    %270 = vmatpush2.msra.mxu0 0.0
    %271 = vmatprep.subr.mxu0 0.0
    %272 = vmatpush2.msra.mxu0 0.0
    %273 = vmatprep.subr.mxu0 0.0
    %274 = vmatpush2.msra.mxu0 0.0
    %275 = vmatprep.subr.mxu0 0.0
    %276 = vmatpush2.msra.mxu0 0.0
    %277 = vmatprep.subr.mxu0 0.0
    %278 = vmatpush2.msra.mxu0 0.0
    %279 = vmatprep.subr.mxu0 0.0
    %280 = vmatpush2.msra.mxu0 0.0
    %281 = vmatprep.subr.mxu0 0.0
    %282 = vmatpush2.msra.mxu0 0.0
    %283 = vmatprep.subr.mxu0 0.0
    %284 = vmatpush2.msra.mxu0 0.0
    %285 = vmatprep.subr.mxu0 0.0
    %286 = vmatpush2.msra.mxu0 0.0
    %287 = vmatprep.subr.mxu0 0.0
    %288 = vmatpush2.msra.mxu0 0.0
    %289 = vmatprep.subr.mxu0 0.0
    %290 = vmatpush2.msra.mxu0 0.0
    %291 = vmatprep.subr.mxu0 0.0
    %292 = vmatpush2.msra.mxu0 0.0
    %293 = vmatprep.subr.mxu0 0.0
    %294 = vmatpush2.msra.mxu0 0.0
    %295 = vmatprep.mubr.f32.mxu0 0.0
    %296 = vmatmul.mubr.f32.gmra.mxu0 %v209
    %v297 = vpop.f32.mrf.mxu0
    %v298 = vadd.f32 %v230, %v297
    %v299 = vpop.f32.mrf.mxu0
    %300 = vdwg.mxu0
    %301 = vadd.xlane.f32.xlu0 %v298
    %v302 = vpop.xlane.xlu0 %301
    %v303 = vmul.f32 %v298, %v298
    %304 = vadd.xlane.f32.xlu0 %v303
    %v305 = vpop.xlane.xlu0 %304
    %v306 = vmul.f32 %v302, 0.03125
    %v307 = vmul.f32 %v305, 0.03125
    %v308 = vmul.f32 %v306, %v306
    %v309 = vsub.f32 %v307, %v308
    %v310 = vmax.f32 %v309, 0.0
    %v311 = vsub.f32 %v298, %v306
    %v312 = vadd.f32 %v310, 1e-05
    %v313 = vrsqrt.pop %v312
    %v314 = vmul.f32 %v311, %v313
    %v315 = vlaneseq
    %v316 = vshrl.u32 %v315, 7
    %v317 = vsub.s32 1, %v316
    %v318 = vrot.slane %v210, %v317
    %v319 = vmul.f32 %v314, %v318
    %v320 = vlaneseq
    %v321 = vshrl.u32 %v320, 7
    %v322 = vsub.s32 2, %v321
    %v323 = vrot.slane %v210, %v322
    %v324 = vadd.f32 %v319, %v323
    %v325 = vmax.f32 %v324, 0.0
    %v326 = vld [vmem:[#allocation11] sm:$0xff]
    %v327 = vld [vmem:[#allocation11 + $0x8] sm:$0xff]
    %v328 = vld [vmem:[#allocation11 + $0x10] sm:$0xff]
    %v329 = vld [vmem:[#allocation11 + $0x18] sm:$0xff]
    %v330 = vld [vmem:[#allocation11 + $0x20] sm:$0xff]
    %v331 = vld [vmem:[#allocation11 + $0x28] sm:$0xff]
    %v332 = vld [vmem:[#allocation11 + $0x30] sm:$0xff]
    %v333 = vld [vmem:[#allocation11 + $0x38] sm:$0xff]
    %v334 = vld [vmem:[#allocation11 + $0x40] sm:$0xff]
    %v335 = vld [vmem:[#allocation11 + $0x48] sm:$0xff]
    %v336 = vld [vmem:[#allocation11 + $0x50] sm:$0xff]
    %v337 = vld [vmem:[#allocation11 + $0x58] sm:$0xff]
    %v338 = vld [vmem:[#allocation11 + $0x60] sm:$0xff]
    %v339 = vld [vmem:[#allocation11 + $0x68] sm:$0xff]
    %v340 = vld [vmem:[#allocation11 + $0x70] sm:$0xff]
    %v341 = vld [vmem:[#allocation11 + $0x78] sm:$0xff]
    %v342 = vld [vmem:[%s6] sm:$0x1]
    %v343 = vlaneseq
    %v344 = vshrl.u32 %v343, 7
    %v345 = vsub.s32 0, %v344
    %v346 = vrot.slane %v342, %v345
    %347 = vmatprep.subr.mxu0 0.0
    %348 = vmatpush1.msra.mxu0 %v341
    %349 = vmatprep.subr.mxu0 0.0
    %350 = vmatpush1.msra.mxu0 %v340
    %351 = vmatprep.subr.mxu0 0.0
    %352 = vmatpush1.msra.mxu0 %v339
    %353 = vmatprep.subr.mxu0 0.0
    %354 = vmatpush1.msra.mxu0 %v338
    %355 = vmatprep.subr.mxu0 0.0
    %356 = vmatpush1.msra.mxu0 %v337
    %357 = vmatprep.subr.mxu0 0.0
    %358 = vmatpush1.msra.mxu0 %v336
    %359 = vmatprep.subr.mxu0 0.0
    %360 = vmatpush1.msra.mxu0 %v335
    %361 = vmatprep.subr.mxu0 0.0
    %362 = vmatpush1.msra.mxu0 %v334
    %363 = vmatprep.subr.mxu0 0.0
    %364 = vmatpush1.msra.mxu0 %v333
    %365 = vmatprep.subr.mxu0 0.0
    %366 = vmatpush1.msra.mxu0 %v332
    %367 = vmatprep.subr.mxu0 0.0
    %368 = vmatpush1.msra.mxu0 %v331
    %369 = vmatprep.subr.mxu0 0.0
    %370 = vmatpush1.msra.mxu0 %v330
    %371 = vmatprep.subr.mxu0 0.0
    %372 = vmatpush1.msra.mxu0 %v329
    %373 = vmatprep.subr.mxu0 0.0
    %374 = vmatpush1.msra.mxu0 %v328
    %375 = vmatprep.subr.mxu0 0.0
    %376 = vmatpush1.msra.mxu0 %v327
    %377 = vmatprep.subr.mxu0 0.0
    %378 = vmatpush1.msra.mxu0 %v326
    %379 = vmatprep.subr.mxu0 0.0
    %380 = vmatpush2.msra.mxu0 0.0
    %381 = vmatprep.subr.mxu0 0.0
    %382 = vmatpush2.msra.mxu0 0.0
    %383 = vmatprep.subr.mxu0 0.0
    %384 = vmatpush2.msra.mxu0 0.0
    %385 = vmatprep.subr.mxu0 0.0
    %386 = vmatpush2.msra.mxu0 0.0
    %387 = vmatprep.subr.mxu0 0.0
    %388 = vmatpush2.msra.mxu0 0.0
    %389 = vmatprep.subr.mxu0 0.0
    %390 = vmatpush2.msra.mxu0 0.0
    %391 = vmatprep.subr.mxu0 0.0
    %392 = vmatpush2.msra.mxu0 0.0
    %393 = vmatprep.subr.mxu0 0.0
    %394 = vmatpush2.msra.mxu0 0.0
    %395 = vmatprep.subr.mxu0 0.0
    %396 = vmatpush2.msra.mxu0 0.0
    %397 = vmatprep.subr.mxu0 0.0
    %398 = vmatpush2.msra.mxu0 0.0
    %399 = vmatprep.subr.mxu0 0.0
    %400 = vmatpush2.msra.mxu0 0.0
    %401 = vmatprep.subr.mxu0 0.0
    %402 = vmatpush2.msra.mxu0 0.0
    %403 = vmatprep.subr.mxu0 0.0
    %404 = vmatpush2.msra.mxu0 0.0
    %405 = vmatprep.subr.mxu0 0.0
    %406 = vmatpush2.msra.mxu0 0.0
    %407 = vmatprep.subr.mxu0 0.0
    %408 = vmatpush2.msra.mxu0 0.0
    %409 = vmatprep.subr.mxu0 0.0
    %410 = vmatpush2.msra.mxu0 0.0
    %411 = vmatprep.mubr.f32.mxu0 0.0
    %412 = vmatmul.mubr.f32.gmra.mxu0 %v325
    %v413 = vpop.f32.mrf.mxu0
    %v414 = vadd.f32 %v346, %v413
    %v415 = vpop.f32.mrf.mxu0
    %416 = vdwg.mxu0
    %v417 = vtanh.pop %v414
    %418 = vst [vmem:[#allocation13] sm:$0xff] %v417
    // Predicated region
    $region54: #{tpu_custom_call.1} parent=1 // pred_check
      _
    $region55: #{tpu_custom_call.1} parent=1 // pred_check_branch
      %420 = sbr.rel (0) target = $region57
    $region56: #{tpu_custom_call.1} parent=1 // pred_region
      %s422 = ssub.s32 128, 128
      %423 = vsyncadd [#allocation4], %s422
      %s425 = sshll.u32 [#allocation13], 4
      %s426 = int_to_ptr.vmem [resolvable:$true] %s425
      %428 = dma.vmem_to_hbm [thread:$0]  %s426, 128, %s7, [#allocation4]
    $region57: #{tpu_custom_call.1} parent=1 // pred_fallthru
      _
    // Predicated region
    $region58: #{tpu_custom_call.1} parent=1 // pred_check
      _
    $region59: #{tpu_custom_call.1} parent=1 // pred_check_branch
      %430 = sbr.rel (0) target = $region61
    $region60: #{tpu_custom_call.1} parent=1 // pred_region
      %431 = dma.done [#allocation4], 128
    $region61: #{tpu_custom_call.1} parent=1 // pred_fallthru
      _
    %432 = vsyncpa [#allocation3], 1
    %433 = vsyncpa [#allocation6], 1
    %434 = vsyncpa [#allocation9], 1
    %435 = vsyncpa [#allocation12], 1
    %436 = vsyncpa [#allocation4], 1

</llo_original>
